<compile_context>
chip_gen: v6e
topology: v6e:2x2x1
jax: 0.10.0
libtpu: 0.0.40
codegen_flags: <defaults>
</compile_context>

<pallas_src>
import functools

import numpy as np
import jax
import jax.numpy as jnp
from jax import lax
from jax.experimental import pallas as pl
from jax.experimental.pallas import tpu as pltpu

_NEG_LARGE = -1.0e30  # finite "-inf" for online-max init (avoids inf-inf NaN)


def _dino_loss_kernel(scalar_ref, teacher_ref, student_ref, center_ref,
                      loss_ref, center_sum_ref,
                      smax_ref, ssum_ref, tmax_ref, tsum_ref, tdot_ref,
                      *, n_crops, n_g_crops):
    """Grid = (batch_tiles, d_tiles); d_tiles is the inner reduction axis.

    scalar_ref     : SMEM f32[2]          [inv_t_temp, inv_s_temp]
    teacher_ref    : VMEM (n_g_crops, TB, TD) block
    student_ref    : VMEM (n_crops,   TB, TD) block
    center_ref     : VMEM (1, TD) block
    loss_ref       : VMEM (1, 1, 128) out block -- per-batch-tile loss partial
    center_sum_ref : VMEM (1, 1, TD)  out block -- per-(tile) teacher col-sum
    smax/ssum_ref  : VMEM (n_crops, TB, 1)   student online logsumexp stats
    tmax/tsum/tdot_ref : VMEM (n_g_crops, TB, 1) teacher online softmax stats
    """
    dj = pl.program_id(1)
    d_last = pl.num_programs(1) - 1

    inv_t_temp = scalar_ref[0]
    inv_s_temp = scalar_ref[1]

    tb = student_ref.shape[1]
    td = student_ref.shape[2]

    @pl.when(dj == 0)
    def _init():
        smax_ref[...] = jnp.full_like(smax_ref, _NEG_LARGE)
        ssum_ref[...] = jnp.zeros_like(ssum_ref)
        tmax_ref[...] = jnp.full_like(tmax_ref, _NEG_LARGE)
        tsum_ref[...] = jnp.zeros_like(tsum_ref)
        tdot_ref[...] = jnp.zeros_like(tdot_ref)

    center = center_ref[...]                                   # (1, TD)

    # ---- student crops: online logsumexp over D tiles + running scaled sum
    def student_body(s, scaled_sum):
        x = student_ref[s].astype(jnp.float32) * inv_s_temp    # (TB, TD)
        m_prev = smax_ref[s]                                    # (TB, 1)
        m_new = jnp.maximum(m_prev, jnp.max(x, axis=-1, keepdims=True))
        corr = jnp.exp(m_prev - m_new)
        e_tile = jnp.sum(jnp.exp(x - m_new), axis=-1, keepdims=True)
        smax_ref[s] = m_new
        ssum_ref[s] = ssum_ref[s] * corr + e_tile
        return scaled_sum + x

    scaled_sum = lax.fori_loop(0, n_crops, student_body,
                               jnp.zeros((tb, td), jnp.float32))

    # ---- teacher crops: column sums + online (max, sum, weighted dot) ----
    def teacher_body(t, col_sum):
        traw = teacher_ref[t].astype(jnp.float32)               # (TB, TD)
        col_sum = col_sum + jnp.sum(traw, axis=0, keepdims=True)  # (1, TD)

        tl = (traw - center) * inv_t_temp
        m_prev = tmax_ref[t]
        m_new = jnp.maximum(m_prev, jnp.max(tl, axis=-1, keepdims=True))
        corr = jnp.exp(m_prev - m_new)
        te = jnp.exp(tl - m_new)                                # unnormalized q
        x_t = student_ref[t].astype(jnp.float32) * inv_s_temp
        diff = scaled_sum - x_t                                 # sum_{s!=t} x_s
        tmax_ref[t] = m_new
        tsum_ref[t] = tsum_ref[t] * corr + jnp.sum(te, axis=-1, keepdims=True)
        tdot_ref[t] = (tdot_ref[t] * corr
                       + jnp.sum(te * diff, axis=-1, keepdims=True))
        return col_sum

    col_sum = lax.fori_loop(0, n_g_crops, teacher_body,
                            jnp.zeros((1, td), jnp.float32))
    center_sum_ref[0] = col_sum            # unique (i, dj) block: write directly

    # ---- finalize this batch tile after the last D tile ----
    @pl.when(dj == d_last)
    def _finalize():
        lse_all = smax_ref[...] + jnp.log(ssum_ref[...])        # (n_crops, TB, 1)
        lse_total = jnp.sum(lse_all, axis=0)                    # (TB, 1)
        ce_rows = jnp.zeros((tb, 1), jnp.float32)
        for t in range(n_g_crops):                              # tiny static loop
            inv_s = pl.reciprocal(tsum_ref[t], approx=False)
            #   sum_{s!=t} sum_d q_t * lp_s
            # = A_t / S_t - (lse_total - lse_t)
            ce_rows = ce_rows + (tdot_ref[t] * inv_s
                                 - (lse_total - lse_all[t]))
        partial_neg = -jnp.sum(ce_rows, axis=0, keepdims=True)  # (1, 1)
        loss_ref[...] = jnp.zeros(loss_ref.shape, jnp.float32) + partial_neg


def _physical_vmem_bytes(default=64 * 1024 * 1024):
    try:
        v = int(pltpu.get_tpu_info().vmem_capacity_bytes)
        if v > 0:
            return v
    except Exception:
        pass
    return default


def _vmem_footprint(tb, td, n_crops, n_g_crops, itemsize):
    inputs = (n_crops + n_g_crops) * tb * td * itemsize   # one block set
    center_in = td * 4
    outs = (128 + td) * 4
    scratch = (2 * n_crops + 3 * n_g_crops) * tb * 128 * 4  # (.,TB,1) lane-padded
    temps = 8 * tb * td * 4                                  # live f32 intermediates
    return 2 * (inputs + center_in + outs) + scratch + temps


def _pick_tiles(batch, d, n_crops, n_g_crops, itemsize, budget):
    """Largest (tb, td) pair (divisors; tb mult of 8 / td mult of 128 unless
    equal to the full dim) whose footprint fits the VMEM budget."""
    def cands(n, unit):
        c = {n}
        c.update(t for t in range(unit, n + 1, unit) if n % t == 0)
        return sorted(c, reverse=True)
    tb_cands = cands(batch, 8)
    td_cands = cands(d, 128)
    best = None
    for tb in tb_cands:
        for td in td_cands:                   # descending: first fit = biggest td
            if _vmem_footprint(tb, td, n_crops, n_g_crops, itemsize) <= budget:
                score = (tb * td, td)
                if best is None or score > best[0]:
                    best = (score, tb, td)
                break
    if best is None:
        return tb_cands[-1], td_cands[-1]
    return best[1], best[2]


class DINOLossPallas:
    """JAX/Pallas port of DINOLoss (forward pass + EMA center update)."""

    def __init__(self, out_dim, n_crops, n_g_crops, warmup_teacher_temp,
                 teacher_temp, warmup_teacher_temp_epochs, n_epochs,
                 student_temp=0.1, center_momentum=0.9,
                 row_block=None, d_block=None, input_dtype=None):
        assert 2 <= n_crops and n_g_crops <= n_crops
        warmup_teacher_temp_epochs = min(n_epochs, warmup_teacher_temp_epochs)
        self.out_dim = out_dim
        self.student_temp = student_temp
        self.center_momentum = center_momentum
        self.n_crops = n_crops
        self.n_g_crops = n_g_crops
        self.row_block = row_block
        self.d_block = d_block
        # bf16 inputs halve HBM traffic (v5e/v6e are HBM-bound); kernel math is f32
        self.input_dtype = input_dtype
        self.world_size = 1
        self.center = jnp.zeros((1, out_dim), dtype=jnp.float32)
        self.teacher_temp_schedule = np.concatenate((
            np.linspace(warmup_teacher_temp, teacher_temp,
                        warmup_teacher_temp_epochs),
            np.ones(n_epochs - warmup_teacher_temp_epochs) * teacher_temp,
        )).astype(np.float32)

    def __call__(self, student_output, teacher_output, epoch):
        n_s_rows, d = student_output.shape
        n_t_rows, d_t = teacher_output.shape
        assert d == self.out_dim and d_t == self.out_dim
        assert n_s_rows % self.n_crops == 0
        assert n_t_rows % self.n_g_crops == 0
        batch = n_s_rows // self.n_crops
        assert n_t_rows // self.n_g_crops == batch

        if self.input_dtype is not None:
            student_output = student_output.astype(self.input_dtype)
            teacher_output = teacher_output.astype(self.input_dtype)

        # crops stacked along rows -> (n_crops, B, D) view (free reshape)
        student_3d = student_output.reshape(self.n_crops, batch, d)
        teacher_3d = teacher_output.reshape(self.n_g_crops, batch, d)

        itemsize = int(jnp.dtype(student_output.dtype).itemsize)
        phys_vmem = _physical_vmem_bytes()
        budget = int(0.40 * phys_vmem)            # generation-aware tile budget
        tb, td = _pick_tiles(batch, d, self.n_crops, self.n_g_crops,
                             itemsize, budget)
        if self.row_block is not None:
            tb = self.row_block
        if self.d_block is not None:
            td = self.d_block
        assert batch % tb == 0 and (tb % 8 == 0 or tb == batch)
        assert d % td == 0 and (td % 128 == 0 or td == d)
        n_btiles = batch // tb
        n_dtiles = d // td

        n_terms = self.n_g_crops * (self.n_crops - 1)
        assert n_terms > 0
        # epoch must be a concrete python int (host-side schedule lookup)
        t_temp = float(self.teacher_temp_schedule[int(epoch)])
        scalars = jnp.array([1.0 / t_temp, 1.0 / self.student_temp],
                            dtype=jnp.float32)

        est = _vmem_footprint(tb, td, self.n_crops, self.n_g_crops, itemsize)
        vmem_limit = int(min(int(0.75 * phys_vmem),          # ~48MiB v7x, ~96MiB v5e/v6e
                             max(32 * 1024 * 1024, int(1.6 * est))))

        kernel = functools.partial(_dino_loss_kernel,
                                   n_crops=self.n_crops,
                                   n_g_crops=self.n_g_crops)

        loss_parts, center_parts = pl.pallas_call(
            kernel,
            out_shape=(
                # per-batch-tile loss partial (lane-dense (1,128) tile)
                jax.ShapeDtypeStruct((n_btiles, 1, 128), jnp.float32),
                # per-(batch-tile, d-tile) teacher column-sum partial
                jax.ShapeDtypeStruct((n_btiles, 1, d), jnp.float32),
            ),
            grid=(n_btiles, n_dtiles),
            in_specs=[
                pl.BlockSpec(memory_space=pltpu.MemorySpace.SMEM),   # scalars
                pl.BlockSpec((self.n_g_crops, tb, td),
                             lambda i, j: (0, i, j)),                # teacher
                pl.BlockSpec((self.n_crops, tb, td),
                             lambda i, j: (0, i, j)),                # student
                pl.BlockSpec((1, td), lambda i, j: (0, j)),          # center
            ],
            out_specs=(
                pl.BlockSpec((1, 1, 128), lambda i, j: (i, 0, 0)),   # loss partial
                pl.BlockSpec((1, 1, td), lambda i, j: (i, 0, j)),    # center partial
            ),
            scratch_shapes=[
                pltpu.VMEM((self.n_crops, tb, 1), jnp.float32),      # student max
                pltpu.VMEM((self.n_crops, tb, 1), jnp.float32),      # student sumexp
                pltpu.VMEM((self.n_g_crops, tb, 1), jnp.float32),    # teacher max
                pltpu.VMEM((self.n_g_crops, tb, 1), jnp.float32),    # teacher sumexp
                pltpu.VMEM((self.n_g_crops, tb, 1), jnp.float32),    # teacher dot
            ],
            compiler_params=pltpu.CompilerParams(
                # batch axis writes disjoint per-tile partial blocks -> safe to
                # shard across v7x's 2 TensorCores; D axis is the reduction.
                dimension_semantics=("parallel", "arbitrary"),
                vmem_limit_bytes=vmem_limit),
        )(scalars, teacher_3d, student_3d, self.center)

        # tiny wrapper-side reductions (keeps the batch axis "parallel")
        loss = jnp.sum(loss_parts[:, 0, 0]) * (1.0 / (batch * n_terms))
        batch_center = (jnp.sum(center_parts, axis=0)
                        / float(n_t_rows * self.world_size))         # (1, D)
        # TODO(synk): dist.all_reduce(batch_center) for multi-host training.
        self.center = (self.center * self.center_momentum
                       + batch_center * (1.0 - self.center_momentum))
        return loss


def _reference_loss(student_output, teacher_output, center, s_temp, t_temp,
                    n_crops, n_g_crops, batch):
    """Pure-JAX reference mirroring the PyTorch forward (for verification)."""
    student_out = student_output / s_temp
    q_all = jax.nn.softmax((teacher_output - center) / t_temp, axis=-1)
    log_p_all = jax.nn.log_softmax(student_out, axis=-1)
    total, n_terms = 0.0, 0
    for i_t in range(n_g_crops):
        q = q_all[i_t * batch:(i_t + 1) * batch]
        for i_s in range(n_crops):
            if i_s == i_t:
                continue
            lp = log_p_all[i_s * batch:(i_s + 1) * batch]
            total = total + jnp.mean(jnp.sum(-q * lp, axis=-1))
            n_terms += 1
    return total / n_terms


if __name__ == "__main__":
    out_dim = 256
    batch = 16
    n_crops = 4      # total student crops
    n_g_crops = 2    # global (teacher) crops

    loss_mod = DINOLossPallas(
        out_dim=out_dim,
        n_crops=n_crops,
        n_g_crops=n_g_crops,
        warmup_teacher_temp=0.04,
        teacher_temp=0.07,
        warmup_teacher_temp_epochs=5,
        n_epochs=10,
        student_temp=0.1,
        center_momentum=0.9,
        row_block=8,    # force a 2x2 grid to exercise both accumulator paths
        d_block=128,
    )

    key = jax.random.PRNGKey(0)
    k1, k2, k3, k4 = jax.random.split(key, 4)
    student_output = jax.random.normal(
        k1, (n_crops * batch, out_dim), dtype=jnp.float32)
    teacher_output = jax.random.normal(
        k2, (n_g_crops * batch, out_dim), dtype=jnp.float32)
    epoch = 3

    # ---- call 1 (zero center) ----
    center0 = loss_mod.center
    loss1 = loss_mod(student_output, teacher_output, epoch)
    jax.block_until_ready(loss1)
    jax.block_until_ready(loss_mod.center)

    t_temp1 = float(loss_mod.teacher_temp_schedule[epoch])
    ref1 = _reference_loss(student_output, teacher_output, center0,
                           loss_mod.student_temp, t_temp1,
                           n_crops, n_g_crops, batch)
    ref_center1 = (center0 * loss_mod.center_momentum
                   + jnp.sum(teacher_output, axis=0, keepdims=True)
                   / teacher_output.shape[0]
                   * (1 - loss_mod.center_momentum))
    assert jnp.allclose(loss1, ref1, rtol=2e-4, atol=1e-4), (loss1, ref1)
    assert jnp.allclose(loss_mod.center, ref_center1, rtol=1e-5, atol=1e-6)

    # ---- call 2 (non-zero center, new inputs, later epoch) ----
    student_output2 = jax.random.normal(
        k3, (n_crops * batch, out_dim), dtype=jnp.float32)
    teacher_output2 = jax.random.normal(
        k4, (n_g_crops * batch, out_dim), dtype=jnp.float32)
    center1 = loss_mod.center
    loss2 = loss_mod(student_output2, teacher_output2, 7)
    jax.block_until_ready(loss2)
    jax.block_until_ready(loss_mod.center)

    t_temp2 = float(loss_mod.teacher_temp_schedule[7])
    ref2 = _reference_loss(student_output2, teacher_output2, center1,
                           loss_mod.student_temp, t_temp2,
                           n_crops, n_g_crops, batch)
    ref_center2 = (center1 * loss_mod.center_momentum
                   + jnp.sum(teacher_output2, axis=0, keepdims=True)
                   / teacher_output2.shape[0]
                   * (1 - loss_mod.center_momentum))
    assert jnp.allclose(loss2, ref2, rtol=2e-4, atol=1e-4), (loss2, ref2)
    assert jnp.allclose(loss_mod.center, ref_center2, rtol=1e-5, atol=1e-6)

    print("KERNEL_OK")
</pallas_src>

<mosaic_0001>
module attributes {stable_mosaic.version = 11 : i64} {
  func.func @_dino_loss_kernel(%arg0: i32, %arg1: i32, %arg2: memref<2xf32, #tpu.memory_space<smem>>, %arg3: memref<2x8x128xf32, #tpu.memory_space<vmem>>, %arg4: memref<4x8x128xf32, #tpu.memory_space<vmem>>, %arg5: memref<1x128xf32, #tpu.memory_space<vmem>>, %arg6: memref<1x1x128xf32, #tpu.memory_space<vmem>>, %arg7: memref<1x1x128xf32, #tpu.memory_space<vmem>>, %arg8: memref<4x8x1xf32, #tpu.memory_space<vmem>>, %arg9: memref<4x8x1xf32, #tpu.memory_space<vmem>>, %arg10: memref<2x8x1xf32, #tpu.memory_space<vmem>>, %arg11: memref<2x8x1xf32, #tpu.memory_space<vmem>>, %arg12: memref<2x8x1xf32, #tpu.memory_space<vmem>>) attributes {dimension_semantics = [#tpu.dimension_semantics<parallel>, #tpu.dimension_semantics<arbitrary>], iteration_bounds = array<i64: 2, 2>, scalar_prefetch = 0 : i64, scratch_operands = 5 : i64, tpu.core_type = #tpu.core_type<tc>, window_params = [{transform_indices = @transform_0, window_bounds = array<i64: 2>}, {transform_indices = @transform_1, window_bounds = array<i64: 2, 8, 128>}, {transform_indices = @transform_2, window_bounds = array<i64: 4, 8, 128>}, {transform_indices = @transform_3, window_bounds = array<i64: 1, 128>}, {transform_indices = @transform_4, window_bounds = array<i64: 1, 1, 128>}, {transform_indices = @transform_5, window_bounds = array<i64: 1, 1, 128>}]} {
    %c0 = arith.constant 0 : index
    %0 = memref.load %arg2[%c0] : memref<2xf32, #tpu.memory_space<smem>>
    %c1 = arith.constant 1 : index
    %1 = memref.load %arg2[%c1] : memref<2xf32, #tpu.memory_space<smem>>
    %c0_i32 = arith.constant 0 : i32
    %2 = arith.cmpi eq, %arg1, %c0_i32 : i32
    %3 = arith.extui %2 : i1 to i32
    %c0_i32_0 = arith.constant 0 : i32
    %4 = arith.cmpi ne, %3, %c0_i32_0 : i32
    scf.if %4 {
      %cst_14 = arith.constant -1.000000e+30 : f32
      %18 = vector.broadcast %cst_14 : f32 to vector<4x8x1xf32>
      %c0_15 = arith.constant 0 : index
      %c0_16 = arith.constant 0 : index
      %c0_17 = arith.constant 0 : index
      %19 = vector.load %arg8[%c0_15, %c0_16, %c0_17] : memref<4x8x1xf32, #tpu.memory_space<vmem>>, vector<4x8x1xf32>
      tpu.vector_store %arg8[%c0_15, %c0_16, %c0_17], %18 {strides = array<i32>} : memref<4x8x1xf32, #tpu.memory_space<vmem>>, vector<4x8x1xf32>,
      %cst_18 = arith.constant 0.000000e+00 : f32
      %20 = vector.broadcast %cst_18 : f32 to vector<4x8x1xf32>
      %c0_19 = arith.constant 0 : index
      %c0_20 = arith.constant 0 : index
      %c0_21 = arith.constant 0 : index
      %21 = vector.load %arg9[%c0_19, %c0_20, %c0_21] : memref<4x8x1xf32, #tpu.memory_space<vmem>>, vector<4x8x1xf32>
      tpu.vector_store %arg9[%c0_19, %c0_20, %c0_21], %20 {strides = array<i32>} : memref<4x8x1xf32, #tpu.memory_space<vmem>>, vector<4x8x1xf32>,
      %cst_22 = arith.constant -1.000000e+30 : f32
      %22 = vector.broadcast %cst_22 : f32 to vector<2x8x1xf32>
      %c0_23 = arith.constant 0 : index
      %c0_24 = arith.constant 0 : index
      %c0_25 = arith.constant 0 : index
      %23 = vector.load %arg10[%c0_23, %c0_24, %c0_25] : memref<2x8x1xf32, #tpu.memory_space<vmem>>, vector<2x8x1xf32>
      tpu.vector_store %arg10[%c0_23, %c0_24, %c0_25], %22 {strides = array<i32>} : memref<2x8x1xf32, #tpu.memory_space<vmem>>, vector<2x8x1xf32>,
      %cst_26 = arith.constant 0.000000e+00 : f32
      %24 = vector.broadcast %cst_26 : f32 to vector<2x8x1xf32>
      %c0_27 = arith.constant 0 : index
      %c0_28 = arith.constant 0 : index
      %c0_29 = arith.constant 0 : index
      %25 = vector.load %arg11[%c0_27, %c0_28, %c0_29] : memref<2x8x1xf32, #tpu.memory_space<vmem>>, vector<2x8x1xf32>
      tpu.vector_store %arg11[%c0_27, %c0_28, %c0_29], %24 {strides = array<i32>} : memref<2x8x1xf32, #tpu.memory_space<vmem>>, vector<2x8x1xf32>,
      %cst_30 = arith.constant 0.000000e+00 : f32
      %26 = vector.broadcast %cst_30 : f32 to vector<2x8x1xf32>
      %c0_31 = arith.constant 0 : index
      %c0_32 = arith.constant 0 : index
      %c0_33 = arith.constant 0 : index
      %27 = vector.load %arg12[%c0_31, %c0_32, %c0_33] : memref<2x8x1xf32, #tpu.memory_space<vmem>>, vector<2x8x1xf32>
      tpu.vector_store %arg12[%c0_31, %c0_32, %c0_33], %26 {strides = array<i32>} : memref<2x8x1xf32, #tpu.memory_space<vmem>>, vector<2x8x1xf32>,
    } else {
    }
    %c0_1 = arith.constant 0 : index
    %c0_2 = arith.constant 0 : index
    %5 = vector.load %arg5[%c0_1, %c0_2] : memref<1x128xf32, #tpu.memory_space<vmem>>, vector<1x128xf32>
    %cst = arith.constant 0.000000e+00 : f32
    %6 = vector.broadcast %cst : f32 to vector<8x128xf32>
    %c0_i32_3 = arith.constant 0 : i32
    %c4_i32 = arith.constant 4 : i32
    %7 = arith.addi %c0_i32_3, %c4_i32 : i32
    %c1_i32 = arith.constant 1 : i32
    %8 = scf.for %arg13 = %c0_i32_3 to %7 step %c1_i32 iter_args(%arg14 = %6) -> (vector<8x128xf32>)  : i32 {
      %18 = arith.index_cast %arg13 : i32 to index
      %c0_14 = arith.constant 0 : index
      %c0_15 = arith.constant 0 : index
      %19 = vector.load %arg4[%18, %c0_14, %c0_15] : memref<4x8x128xf32, #tpu.memory_space<vmem>>, vector<1x8x128xf32>
      %20 = vector.shape_cast %19 : vector<1x8x128xf32> to vector<8x128xf32>
      %21 = vector.broadcast %1 : f32 to vector<8x128xf32>
      %22 = arith.mulf %20, %21 : vector<8x128xf32>
      %23 = arith.index_cast %arg13 : i32 to index
      %c0_16 = arith.constant 0 : index
      %c0_17 = arith.constant 0 : index
      %24 = vector.load %arg8[%23, %c0_16, %c0_17] : memref<4x8x1xf32, #tpu.memory_space<vmem>>, vector<1x8x1xf32>
      %25 = vector.shape_cast %24 : vector<1x8x1xf32> to vector<8x1xf32>
      %cst_18 = arith.constant dense<0xFF800000> : vector<8xf32>
      %26 = vector.multi_reduction <maximumf>, %22, %cst_18 [1] : vector<8x128xf32> to vector<8xf32>
      %27 = vector.shape_cast %26 : vector<8xf32> to vector<8x1xf32>
      %28 = arith.maximumf %25, %27 : vector<8x1xf32>
      %29 = arith.subf %25, %28 : vector<8x1xf32>
      %30 = math.exp %29 : vector<8x1xf32>
      %31 = vector.broadcast %28 : vector<8x1xf32> to vector<8x128xf32>
      %32 = arith.subf %22, %31 : vector<8x128xf32>
      %33 = math.exp %32 : vector<8x128xf32>
      %cst_19 = arith.constant dense<0.000000e+00> : vector<8xf32>
      %34 = vector.multi_reduction <add>, %33, %cst_19 [1] : vector<8x128xf32> to vector<8xf32>
      %35 = vector.shape_cast %34 : vector<8xf32> to vector<8x1xf32>
      %36 = arith.index_cast %arg13 : i32 to index
      %c0_20 = arith.constant 0 : index
      %c0_21 = arith.constant 0 : index
      %37 = vector.load %arg8[%36, %c0_20, %c0_21] : memref<4x8x1xf32, #tpu.memory_space<vmem>>, vector<1x8x1xf32>
      %38 = vector.shape_cast %37 : vector<1x8x1xf32> to vector<8x1xf32>
      %39 = vector.shape_cast %28 : vector<8x1xf32> to vector<1x8x1xf32>
      tpu.vector_store %arg8[%36, %c0_20, %c0_21], %39 {strides = array<i32>} : memref<4x8x1xf32, #tpu.memory_space<vmem>>, vector<1x8x1xf32>,
      %40 = arith.index_cast %arg13 : i32 to index
      %c0_22 = arith.constant 0 : index
      %c0_23 = arith.constant 0 : index
      %41 = vector.load %arg9[%40, %c0_22, %c0_23] : memref<4x8x1xf32, #tpu.memory_space<vmem>>, vector<1x8x1xf32>
      %42 = vector.shape_cast %41 : vector<1x8x1xf32> to vector<8x1xf32>
      %43 = arith.mulf %42, %30 : vector<8x1xf32>
      %44 = arith.addf %43, %35 : vector<8x1xf32>
      %45 = arith.index_cast %arg13 : i32 to index
      %c0_24 = arith.constant 0 : index
      %c0_25 = arith.constant 0 : index
      %46 = vector.load %arg9[%45, %c0_24, %c0_25] : memref<4x8x1xf32, #tpu.memory_space<vmem>>, vector<1x8x1xf32>
      %47 = vector.shape_cast %46 : vector<1x8x1xf32> to vector<8x1xf32>
      %48 = vector.shape_cast %44 : vector<8x1xf32> to vector<1x8x1xf32>
      tpu.vector_store %arg9[%45, %c0_24, %c0_25], %48 {strides = array<i32>} : memref<4x8x1xf32, #tpu.memory_space<vmem>>, vector<1x8x1xf32>,
      %49 = arith.addf %arg14, %22 : vector<8x128xf32>
      scf.yield %49 : vector<8x128xf32>
    }
    %c4_i32_4 = arith.constant 4 : i32
    %cst_5 = arith.constant 0.000000e+00 : f32
    %9 = vector.broadcast %cst_5 : f32 to vector<1x128xf32>
    %c0_i32_6 = arith.constant 0 : i32
    %c2_i32 = arith.constant 2 : i32
    %10 = arith.addi %c0_i32_6, %c2_i32 : i32
    %c1_i32_7 = arith.constant 1 : i32
    %11 = scf.for %arg13 = %c0_i32_6 to %10 step %c1_i32_7 iter_args(%arg14 = %9) -> (vector<1x128xf32>)  : i32 {
      %18 = arith.index_cast %arg13 : i32 to index
      %c0_14 = arith.constant 0 : index
      %c0_15 = arith.constant 0 : index
      %19 = vector.load %arg3[%18, %c0_14, %c0_15] : memref<2x8x128xf32, #tpu.memory_space<vmem>>, vector<1x8x128xf32>
      %20 = vector.shape_cast %19 : vector<1x8x128xf32> to vector<8x128xf32>
      %cst_16 = arith.constant dense<0.000000e+00> : vector<128xf32>
      %21 = vector.multi_reduction <add>, %20, %cst_16 [0] : vector<8x128xf32> to vector<128xf32>
      %22 = vector.shape_cast %21 : vector<128xf32> to vector<1x128xf32>
      %23 = arith.addf %arg14, %22 : vector<1x128xf32>
      %24 = vector.broadcast %5 : vector<1x128xf32> to vector<8x128xf32>
      %25 = arith.subf %20, %24 : vector<8x128xf32>
      %26 = vector.broadcast %0 : f32 to vector<8x128xf32>
      %27 = arith.mulf %25, %26 : vector<8x128xf32>
      %28 = arith.index_cast %arg13 : i32 to index
      %c0_17 = arith.constant 0 : index
      %c0_18 = arith.constant 0 : index
      %29 = vector.load %arg10[%28, %c0_17, %c0_18] : memref<2x8x1xf32, #tpu.memory_space<vmem>>, vector<1x8x1xf32>
      %30 = vector.shape_cast %29 : vector<1x8x1xf32> to vector<8x1xf32>
      %cst_19 = arith.constant dense<0xFF800000> : vector<8xf32>
      %31 = vector.multi_reduction <maximumf>, %27, %cst_19 [1] : vector<8x128xf32> to vector<8xf32>
      %32 = vector.shape_cast %31 : vector<8xf32> to vector<8x1xf32>
      %33 = arith.maximumf %30, %32 : vector<8x1xf32>
      %34 = arith.subf %30, %33 : vector<8x1xf32>
      %35 = math.exp %34 : vector<8x1xf32>
      %36 = vector.broadcast %33 : vector<8x1xf32> to vector<8x128xf32>
      %37 = arith.subf %27, %36 : vector<8x128xf32>
      %38 = math.exp %37 : vector<8x128xf32>
      %39 = arith.index_cast %arg13 : i32 to index
      %c0_20 = arith.constant 0 : index
      %c0_21 = arith.constant 0 : index
      %40 = vector.load %arg4[%39, %c0_20, %c0_21] : memref<4x8x128xf32, #tpu.memory_space<vmem>>, vector<1x8x128xf32>
      %41 = vector.shape_cast %40 : vector<1x8x128xf32> to vector<8x128xf32>
      %42 = vector.broadcast %1 : f32 to vector<8x128xf32>
      %43 = arith.mulf %41, %42 : vector<8x128xf32>
      %44 = arith.subf %8, %43 : vector<8x128xf32>
      %45 = arith.index_cast %arg13 : i32 to index
      %c0_22 = arith.constant 0 : index
      %c0_23 = arith.constant 0 : index
      %46 = vector.load %arg10[%45, %c0_22, %c0_23] : memref<2x8x1xf32, #tpu.memory_space<vmem>>, vector<1x8x1xf32>
      %47 = vector.shape_cast %46 : vector<1x8x1xf32> to vector<8x1xf32>
      %48 = vector.shape_cast %33 : vector<8x1xf32> to vector<1x8x1xf32>
      tpu.vector_store %arg10[%45, %c0_22, %c0_23], %48 {strides = array<i32>} : memref<2x8x1xf32, #tpu.memory_space<vmem>>, vector<1x8x1xf32>,
      %49 = arith.index_cast %arg13 : i32 to index
      %c0_24 = arith.constant 0 : index
      %c0_25 = arith.constant 0 : index
      %50 = vector.load %arg11[%49, %c0_24, %c0_25] : memref<2x8x1xf32, #tpu.memory_space<vmem>>, vector<1x8x1xf32>
      %51 = vector.shape_cast %50 : vector<1x8x1xf32> to vector<8x1xf32>
      %52 = arith.mulf %51, %35 : vector<8x1xf32>
      %cst_26 = arith.constant dense<0.000000e+00> : vector<8xf32>
      %53 = vector.multi_reduction <add>, %38, %cst_26 [1] : vector<8x128xf32> to vector<8xf32>
      %54 = vector.shape_cast %53 : vector<8xf32> to vector<8x1xf32>
      %55 = arith.addf %52, %54 : vector<8x1xf32>
      %56 = arith.index_cast %arg13 : i32 to index
      %c0_27 = arith.constant 0 : index
      %c0_28 = arith.constant 0 : index
      %57 = vector.load %arg11[%56, %c0_27, %c0_28] : memref<2x8x1xf32, #tpu.memory_space<vmem>>, vector<1x8x1xf32>
      %58 = vector.shape_cast %57 : vector<1x8x1xf32> to vector<8x1xf32>
      %59 = vector.shape_cast %55 : vector<8x1xf32> to vector<1x8x1xf32>
      tpu.vector_store %arg11[%56, %c0_27, %c0_28], %59 {strides = array<i32>} : memref<2x8x1xf32, #tpu.memory_space<vmem>>, vector<1x8x1xf32>,
      %60 = arith.index_cast %arg13 : i32 to index
      %c0_29 = arith.constant 0 : index
      %c0_30 = arith.constant 0 : index
      %61 = vector.load %arg12[%60, %c0_29, %c0_30] : memref<2x8x1xf32, #tpu.memory_space<vmem>>, vector<1x8x1xf32>
      %62 = vector.shape_cast %61 : vector<1x8x1xf32> to vector<8x1xf32>
      %63 = arith.mulf %62, %35 : vector<8x1xf32>
      %64 = arith.mulf %38, %44 : vector<8x128xf32>
      %cst_31 = arith.constant dense<0.000000e+00> : vector<8xf32>
      %65 = vector.multi_reduction <add>, %64, %cst_31 [1] : vector<8x128xf32> to vector<8xf32>
      %66 = vector.shape_cast %65 : vector<8xf32> to vector<8x1xf32>
      %67 = arith.addf %63, %66 : vector<8x1xf32>
      %68 = arith.index_cast %arg13 : i32 to index
      %c0_32 = arith.constant 0 : index
      %c0_33 = arith.constant 0 : index
      %69 = vector.load %arg12[%68, %c0_32, %c0_33] : memref<2x8x1xf32, #tpu.memory_space<vmem>>, vector<1x8x1xf32>
      %70 = vector.shape_cast %69 : vector<1x8x1xf32> to vector<8x1xf32>
      %71 = vector.shape_cast %67 : vector<8x1xf32> to vector<1x8x1xf32>
      tpu.vector_store %arg12[%68, %c0_32, %c0_33], %71 {strides = array<i32>} : memref<2x8x1xf32, #tpu.memory_space<vmem>>, vector<1x8x1xf32>,
      scf.yield %23 : vector<1x128xf32>
    }
    %c2_i32_8 = arith.constant 2 : i32
    %c0_9 = arith.constant 0 : index
    %c0_10 = arith.constant 0 : index
    %c0_11 = arith.constant 0 : index
    %12 = vector.load %arg7[%c0_9, %c0_10, %c0_11] : memref<1x1x128xf32, #tpu.memory_space<vmem>>, vector<1x1x128xf32>
    %13 = vector.shape_cast %12 : vector<1x1x128xf32> to vector<1x128xf32>
    %14 = vector.shape_cast %11 : vector<1x128xf32> to vector<1x1x128xf32>
    tpu.vector_store %arg7[%c0_9, %c0_10, %c0_11], %14 {strides = array<i32>} : memref<1x1x128xf32, #tpu.memory_space<vmem>>, vector<1x1x128xf32>,
    %c1_i32_12 = arith.constant 1 : i32
    %15 = arith.cmpi eq, %arg1, %c1_i32_12 : i32
    %16 = arith.extui %15 : i1 to i32
    %c0_i32_13 = arith.constant 0 : i32
    %17 = arith.cmpi ne, %16, %c0_i32_13 : i32
    scf.if %17 {
      %c0_14 = arith.constant 0 : index
      %c0_15 = arith.constant 0 : index
      %c0_16 = arith.constant 0 : index
      %18 = vector.load %arg8[%c0_14, %c0_15, %c0_16] : memref<4x8x1xf32, #tpu.memory_space<vmem>>, vector<4x8x1xf32>
      %c0_17 = arith.constant 0 : index
      %c0_18 = arith.constant 0 : index
      %c0_19 = arith.constant 0 : index
      %19 = vector.load %arg9[%c0_17, %c0_18, %c0_19] : memref<4x8x1xf32, #tpu.memory_space<vmem>>, vector<4x8x1xf32>
      %20 = math.log %19 : vector<4x8x1xf32>
      %21 = arith.addf %18, %20 : vector<4x8x1xf32>
      %cst_20 = arith.constant dense<0.000000e+00> : vector<8x1xf32>
      %22 = vector.multi_reduction <add>, %21, %cst_20 [0] : vector<4x8x1xf32> to vector<8x1xf32>
      %cst_21 = arith.constant 0.000000e+00 : f32
      %23 = vector.broadcast %cst_21 : f32 to vector<8x1xf32>
      %c0_22 = arith.constant 0 : index
      %c0_23 = arith.constant 0 : index
      %c0_24 = arith.constant 0 : index
      %24 = vector.load %arg11[%c0_22, %c0_23, %c0_24] : memref<2x8x1xf32, #tpu.memory_space<vmem>>, vector<1x8x1xf32>
      %25 = vector.shape_cast %24 : vector<1x8x1xf32> to vector<8x1xf32>
      %26 = tpu.reciprocal %25 : vector<8x1xf32> -> vector<8x1xf32>
      %c0_25 = arith.constant 0 : index
      %c0_26 = arith.constant 0 : index
      %c0_27 = arith.constant 0 : index
      %27 = vector.load %arg12[%c0_25, %c0_26, %c0_27] : memref<2x8x1xf32, #tpu.memory_space<vmem>>, vector<1x8x1xf32>
      %28 = vector.shape_cast %27 : vector<1x8x1xf32> to vector<8x1xf32>
      %29 = arith.mulf %28, %26 : vector<8x1xf32>
      %30 = vector.extract_strided_slice %21 {offsets = [0, 0, 0], sizes = [1, 8, 1], strides = [1, 1, 1]} : vector<4x8x1xf32> to vector<1x8x1xf32>
      %31 = vector.shape_cast %30 : vector<1x8x1xf32> to vector<8x1xf32>
      %32 = arith.subf %22, %31 : vector<8x1xf32>
      %33 = arith.subf %29, %32 : vector<8x1xf32>
      %34 = arith.addf %23, %33 : vector<8x1xf32>
      %c1_28 = arith.constant 1 : index
      %c0_29 = arith.constant 0 : index
      %c0_30 = arith.constant 0 : index
      %35 = vector.load %arg11[%c1_28, %c0_29, %c0_30] : memref<2x8x1xf32, #tpu.memory_space<vmem>>, vector<1x8x1xf32>
      %36 = vector.shape_cast %35 : vector<1x8x1xf32> to vector<8x1xf32>
      %37 = tpu.reciprocal %36 : vector<8x1xf32> -> vector<8x1xf32>
      %c1_31 = arith.constant 1 : index
      %c0_32 = arith.constant 0 : index
      %c0_33 = arith.constant 0 : index
      %38 = vector.load %arg12[%c1_31, %c0_32, %c0_33] : memref<2x8x1xf32, #tpu.memory_space<vmem>>, vector<1x8x1xf32>
      %39 = vector.shape_cast %38 : vector<1x8x1xf32> to vector<8x1xf32>
      %40 = arith.mulf %39, %37 : vector<8x1xf32>
      %41 = vector.extract_strided_slice %21 {offsets = [1, 0, 0], sizes = [1, 8, 1], strides = [1, 1, 1]} : vector<4x8x1xf32> to vector<1x8x1xf32>
      %42 = vector.shape_cast %41 : vector<1x8x1xf32> to vector<8x1xf32>
      %43 = arith.subf %22, %42 : vector<8x1xf32>
      %44 = arith.subf %40, %43 : vector<8x1xf32>
      %45 = arith.addf %34, %44 : vector<8x1xf32>
      %cst_34 = arith.constant dense<0.000000e+00> : vector<1xf32>
      %46 = vector.multi_reduction <add>, %45, %cst_34 [0] : vector<8x1xf32> to vector<1xf32>
      %47 = vector.shape_cast %46 : vector<1xf32> to vector<1x1xf32>
      %cst_35 = arith.constant 0.000000e+00 : f32
      %48 = vector.broadcast %cst_35 : f32 to vector<1x1xf32>
      %49 = arith.subf %48, %47 : vector<1x1xf32>
      %cst_36 = arith.constant 0.000000e+00 : f32
      %50 = vector.broadcast %cst_36 : f32 to vector<1x1x128xf32>
      %51 = vector.shape_cast %49 : vector<1x1xf32> to vector<1x1x1xf32>
      %52 = vector.broadcast %51 : vector<1x1x1xf32> to vector<1x1x128xf32>
      %53 = arith.addf %50, %52 : vector<1x1x128xf32>
      %c0_37 = arith.constant 0 : index
      %c0_38 = arith.constant 0 : index
      %c0_39 = arith.constant 0 : index
      %54 = vector.load %arg6[%c0_37, %c0_38, %c0_39] : memref<1x1x128xf32, #tpu.memory_space<vmem>>, vector<1x1x128xf32>
      tpu.vector_store %arg6[%c0_37, %c0_38, %c0_39], %53 {strides = array<i32>} : memref<1x1x128xf32, #tpu.memory_space<vmem>>, vector<1x1x128xf32>,
    } else {
    }
    return
  }
  func.func @transform_0(%arg0: i32, %arg1: i32) -> i32 {
    %c0_i32 = arith.constant 0 : i32
    %c0_i32_0 = arith.constant 0 : i32
    return %c0_i32 : i32
  }
  func.func @transform_1(%arg0: i32, %arg1: i32) -> (i32, i32, i32) {
    %c0_i32 = arith.constant 0 : i32
    %c0_i32_0 = arith.constant 0 : i32
    return %c0_i32, %arg0, %arg1 : i32, i32, i32
  }
  func.func @transform_2(%arg0: i32, %arg1: i32) -> (i32, i32, i32) {
    %c0_i32 = arith.constant 0 : i32
    %c0_i32_0 = arith.constant 0 : i32
    return %c0_i32, %arg0, %arg1 : i32, i32, i32
  }
  func.func @transform_3(%arg0: i32, %arg1: i32) -> (i32, i32) {
    %c0_i32 = arith.constant 0 : i32
    %c0_i32_0 = arith.constant 0 : i32
    return %c0_i32, %arg1 : i32, i32
  }
  func.func @transform_4(%arg0: i32, %arg1: i32) -> (i32, i32, i32) {
    %c0_i32 = arith.constant 0 : i32
    %c0_i32_0 = arith.constant 0 : i32
    %c0_i32_1 = arith.constant 0 : i32
    return %arg0, %c0_i32, %c0_i32_0 : i32, i32, i32
  }
  func.func @transform_5(%arg0: i32, %arg1: i32) -> (i32, i32, i32) {
    %c0_i32 = arith.constant 0 : i32
    %c0_i32_0 = arith.constant 0 : i32
    return %arg0, %c0_i32, %arg1 : i32, i32, i32
  }
}

</mosaic_0001>

<llo_original>
// kernel: tpu_custom_call.1
$region0: #{tpu_custom_call.1}
  #allocation0 [shape = 'u32[]', space=smem, size = 0x4, offset = 0x4, fixed_abs, tag = 'smem constant byte address 0x4 - core index']
  #allocation1 [shape = 'u32[144,128]{1,0:T(1,128)}', space=vmem, size = 0x12000, scoped, tag = 'internal scratch']
  #allocation2 [shape = 'f32[4,8,1]{2,1,0:T(8,128)}', space=vmem, size = 0x4000, scoped, tag = 'scratch operand']
  #allocation3 [shape = 'f32[4,8,1]{2,1,0:T(8,128)}', space=vmem, size = 0x4000, scoped, tag = 'scratch operand']
  #allocation4 [shape = 'f32[2,8,1]{2,1,0:T(8,128)}', space=vmem, size = 0x2000, scoped, tag = 'scratch operand']
  #allocation5 [shape = 'f32[2,8,1]{2,1,0:T(8,128)}', space=vmem, size = 0x2000, scoped, tag = 'scratch operand']
  #allocation6 [shape = 'f32[2,8,1]{2,1,0:T(8,128)}', space=vmem, size = 0x2000, scoped, tag = 'scratch operand']
  %s0 = inlined_call_operand.hbm [shape: f32[2], index: 0, kind: input, shape index: {}]
  %s1 = inlined_call_operand.hbm [shape: f32[2,16,256], index: 1, kind: input, shape index: {}]
  %s2 = inlined_call_operand.hbm [shape: f32[4,16,256], index: 2, kind: input, shape index: {}]
  %s3 = inlined_call_operand.vmem [shape: f32[1,256], index: 3, kind: input, shape index: {}]
  %s4 = inlined_call_operand.hbm [shape: f32[2,1,128], index: 4, kind: output, shape index: {0}]
  %s5 = inlined_call_operand.hbm [shape: f32[2,1,256], index: 5, kind: output, shape index: {1}]
  %6 = xla_tuple %s4, %s5
  %s7 = sld [smem:[#allocation0]]
  $region91: #{tpu_custom_call.1} parent=0
    _
  %s9 = ssub.s32 1, %s7
  %s10 = scalar_select 0, %s9, %s7
  $region1: #{tpu_custom_call.1} parent=0
    #allocation7 [shape = 'u8[512]{0}', space=smem, size = 0x200, scoped, tag = 'input window, operand 0, single buffered']
    #allocation8 [shape = 's32[2]{0}', space=sflag, size = 0x8, scoped, tag = 'scoped memory for tpu_custom_call.1']
    #allocation9 [shape = 's32[2]{0}', space=sflag, size = 0x8, scoped, tag = 'scoped memory for tpu_custom_call.1']
    #allocation10 [shape = 's32[2]{0}', space=sflag, size = 0x8, scoped, tag = 'scoped memory for tpu_custom_call.1']
    #allocation11 [shape = 'u8[16384]{0}', space=vmem, size = 0x4000, scoped, tag = 'input window, operand 1']
    #allocation12 [shape = 'u8[32768]{0}', space=vmem, size = 0x8000, scoped, tag = 'input window, operand 2']
    #allocation13 [shape = 's32[2]{0}', space=sflag, size = 0x8, scoped, tag = 'scoped memory for tpu_custom_call.1']
    #allocation14 [shape = 'u8[1024]{0}', space=vmem, size = 0x400, scoped, tag = 'output window, operand 0']
    #allocation15 [shape = 'u8[1024]{0}', space=vmem, size = 0x400, scoped, tag = 'output window, operand 1']
    #allocation16 [shape = 's32[2]{0}', space=sflag, size = 0x8, scoped, tag = 'scoped memory for tpu_custom_call.1']
    %11 = vsyncpa [#allocation10], 0
    %12 = vsyncpa [#allocation8], 0
    %s13 = scalar_lea.sflag [#allocation8], 1
    %14 = vsyncpa %s13, 0
    %15 = vsyncpa [#allocation13], 0
    %s16 = scalar_lea.sflag [#allocation13], 1
    %17 = vsyncpa %s16, 0
    %18 = vsyncpa [#allocation9], 0
    %s19 = scalar_lea.sflag [#allocation9], 1
    %20 = vsyncpa %s19, 0
    %21 = vsyncpa [#allocation16], 0
    %s22 = scalar_lea.sflag [#allocation16], 1
    %23 = vsyncpa %s22, 0
    loop: start=0, step=1, limit=6
    $region2: #{tpu_custom_call.1} parent=1 // loop_pre_header
      _
    $region3: #{tpu_custom_call.1} parent=1 // loop_header
      %s25 = sphi 0, %s29
      %p26 = scmp.ge.s32.totalorder %s25, 6
      %s32 = sphi 0, %s44
      %s33 = sphi 0, %s40
      %s34 = sphi 0, %s32
      %s35 = sphi 0, %s33
      %s36 = sphi 0, %s34
      %s37 = sphi 0, %s35
      %s45 = sphi 0, %s45
      %s47 = sphi 0, %s45
      %s48 = sphi 0, %s47
      %s62 = sphi 0, %s48
      %s70 = sphi 0, %s72
      %s73 = sphi 0, %s70
      %s74 = sphi 0, %s73
      %s90 = sphi 0, %s74
      %s98 = sphi 0, %s100
      %s101 = sphi 0, %s98
      %s102 = sphi 0, %s101
      %s118 = sphi 0, %s102
      %s124 = sphi 0, %s126
      %s127 = sphi 0, %s124
      %s128 = sphi 0, %s127
      %s144 = sphi 0, %s128
      %s150 = sphi 0, %s152
      %s153 = sphi 0, %s150
      %s154 = sphi 0, %s153
      %s170 = sphi 0, %s154
      %s178 = sphi 0, %s180
      %s181 = sphi 0, %s178
      %s182 = sphi 0, %s181
      %s198 = sphi 0, %s182
    $region4: #{tpu_custom_call.1} parent=1 // loop_header_branch
      %28 = sbr.rel (%p26) target = $region8
    $region5: #{tpu_custom_call.1} parent=1 // loop_body
      %s30 = ssub.s32 %s25, 1
      %s31 = ssub.s32 %s25, 2
      %s38 = sadd.s32 1, %s33
      %p39 = scmp.ge.s32.totalorder %s38, 2
      %s40 = scalar_select %p39, 0, %s38
      %s41 = sadd.s32 1, %s32
      %s42 = scalar_select %p39, %s41, %s32
      %p43 = scmp.ge.s32.totalorder %s42, 2
      %s44 = scalar_select %p43, 0, %s42
      %s46 = sadd.s32 %s45, 1
      %p49 = scmp.eq.s32.totalorder %s25, 3
      %p50 = scmp.ne.s32.totalorder %s45, %s47
      %p51 = scmp.eq.s32.totalorder %s25, 0
      %p52 = por %p50, %p51
      %p53 = scmp.ne.s32.totalorder %s45, %s47
      %p54 = scmp.eq.s32.totalorder %s30, 3
      %p55 = por %p53, %p54
      %p56 = scmp.ne.s32.totalorder %s47, %s48
      %p57 = scmp.eq.s32.totalorder %s30, 0
      %p58 = por %p56, %p57
      %p59 = scmp.ne.s32.totalorder %s47, %s48
      %p60 = scmp.eq.s32.totalorder %s31, 3
      %p61 = por %p59, %p60
      %p63 = scmp.ne.s32.totalorder %s48, %s62
      %p64 = scmp.eq.s32.totalorder %s31, 0
      %p65 = por %p63, %p64
      %s66 = ssub.s32 %s32, %s44
      %s67 = ssub.s32 %s33, %s40
      %s68 = sor.u32 %s66, %s67
      %p69 = scmp.eq.s32.totalorder %s68, 0
      %s71 = sadd.s32 %s70, 1
      %s72 = scalar_select %p69, %s70, %s71
      %p75 = pneg %p69
      %p76 = scmp.eq.s32.totalorder %s25, 3
      %p77 = por %p75, %p76
      %p78 = scmp.ne.s32.totalorder %s70, %s73
      %p79 = scmp.eq.s32.totalorder %s25, 0
      %p80 = por %p78, %p79
      %p81 = scmp.ne.s32.totalorder %s70, %s73
      %p82 = scmp.eq.s32.totalorder %s30, 3
      %p83 = por %p81, %p82
      %p84 = scmp.ne.s32.totalorder %s73, %s74
      %p85 = scmp.eq.s32.totalorder %s30, 0
      %p86 = por %p84, %p85
      %p87 = scmp.ne.s32.totalorder %s73, %s74
      %p88 = scmp.eq.s32.totalorder %s31, 3
      %p89 = por %p87, %p88
      %p91 = scmp.ne.s32.totalorder %s74, %s90
      %p92 = scmp.eq.s32.totalorder %s31, 0
      %p93 = por %p91, %p92
      %s94 = ssub.s32 %s32, %s44
      %s95 = ssub.s32 %s33, %s40
      %s96 = sor.u32 %s94, %s95
      %p97 = scmp.eq.s32.totalorder %s96, 0
      %s99 = sadd.s32 %s98, 1
      %s100 = scalar_select %p97, %s98, %s99
      %p103 = pneg %p97
      %p104 = scmp.eq.s32.totalorder %s25, 3
      %p105 = por %p103, %p104
      %p106 = scmp.ne.s32.totalorder %s98, %s101
      %p107 = scmp.eq.s32.totalorder %s25, 0
      %p108 = por %p106, %p107
      %p109 = scmp.ne.s32.totalorder %s98, %s101
      %p110 = scmp.eq.s32.totalorder %s30, 3
      %p111 = por %p109, %p110
      %p112 = scmp.ne.s32.totalorder %s101, %s102
      %p113 = scmp.eq.s32.totalorder %s30, 0
      %p114 = por %p112, %p113
      %p115 = scmp.ne.s32.totalorder %s101, %s102
      %p116 = scmp.eq.s32.totalorder %s31, 3
      %p117 = por %p115, %p116
      %p119 = scmp.ne.s32.totalorder %s102, %s118
      %p120 = scmp.eq.s32.totalorder %s31, 0
      %p121 = por %p119, %p120
      %s122 = ssub.s32 %s33, %s40
      %p123 = scmp.eq.s32.totalorder %s122, 0
      %s125 = sadd.s32 %s124, 1
      %s126 = scalar_select %p123, %s124, %s125
      %p129 = pneg %p123
      %p130 = scmp.eq.s32.totalorder %s25, 3
      %p131 = por %p129, %p130
      %p132 = scmp.ne.s32.totalorder %s124, %s127
      %p133 = scmp.eq.s32.totalorder %s25, 0
      %p134 = por %p132, %p133
      %p135 = scmp.ne.s32.totalorder %s124, %s127
      %p136 = scmp.eq.s32.totalorder %s30, 3
      %p137 = por %p135, %p136
      %p138 = scmp.ne.s32.totalorder %s127, %s128
      %p139 = scmp.eq.s32.totalorder %s30, 0
      %p140 = por %p138, %p139
      %p141 = scmp.ne.s32.totalorder %s127, %s128
      %p142 = scmp.eq.s32.totalorder %s31, 3
      %p143 = por %p141, %p142
      %p145 = scmp.ne.s32.totalorder %s128, %s144
      %p146 = scmp.eq.s32.totalorder %s31, 0
      %p147 = por %p145, %p146
      %s148 = ssub.s32 %s32, %s44
      %p149 = scmp.eq.s32.totalorder %s148, 0
      %s151 = sadd.s32 %s150, 1
      %s152 = scalar_select %p149, %s150, %s151
      %p155 = pneg %p149
      %p156 = scmp.eq.s32.totalorder %s25, 3
      %p157 = por %p155, %p156
      %p158 = scmp.ne.s32.totalorder %s150, %s153
      %p159 = scmp.eq.s32.totalorder %s25, 0
      %p160 = por %p158, %p159
      %p161 = scmp.ne.s32.totalorder %s150, %s153
      %p162 = scmp.eq.s32.totalorder %s30, 3
      %p163 = por %p161, %p162
      %p164 = scmp.ne.s32.totalorder %s153, %s154
      %p165 = scmp.eq.s32.totalorder %s30, 0
      %p166 = por %p164, %p165
      %p167 = scmp.ne.s32.totalorder %s153, %s154
      %p168 = scmp.eq.s32.totalorder %s31, 3
      %p169 = por %p167, %p168
      %p171 = scmp.ne.s32.totalorder %s154, %s170
      %p172 = scmp.eq.s32.totalorder %s31, 0
      %p173 = por %p171, %p172
      %s174 = ssub.s32 %s32, %s44
      %s175 = ssub.s32 %s33, %s40
      %s176 = sor.u32 %s174, %s175
      %p177 = scmp.eq.s32.totalorder %s176, 0
      %s179 = sadd.s32 %s178, 1
      %s180 = scalar_select %p177, %s178, %s179
      %p183 = pneg %p177
      %p184 = scmp.eq.s32.totalorder %s25, 3
      %p185 = por %p183, %p184
      %p186 = scmp.ne.s32.totalorder %s178, %s181
      %p187 = scmp.eq.s32.totalorder %s25, 0
      %p188 = por %p186, %p187
      %p189 = scmp.ne.s32.totalorder %s178, %s181
      %p190 = scmp.eq.s32.totalorder %s30, 3
      %p191 = por %p189, %p190
      %p192 = scmp.ne.s32.totalorder %s181, %s182
      %p193 = scmp.eq.s32.totalorder %s30, 0
      %p194 = por %p192, %p193
      %p195 = scmp.ne.s32.totalorder %s181, %s182
      %p196 = scmp.eq.s32.totalorder %s31, 3
      %p197 = por %p195, %p196
      %p199 = scmp.ne.s32.totalorder %s182, %s198
      %p200 = scmp.eq.s32.totalorder %s31, 0
      %p201 = por %p199, %p200
      %p202 = scmp.le.s32.totalorder 1, %s25
      %p203 = scmp.lt.s32.totalorder %s25, 5
      %p204 = pnand %p202, %p203
      %p205 = pneg %p204
      // Predicated region
      $region9: #{tpu_custom_call.1} parent=5 // pred_check
        _
      $region10: #{tpu_custom_call.1} parent=5 // pred_check_branch
        %207 = sbr.rel (%p204) target = $region12
      $region11: #{tpu_custom_call.1} parent=5 // pred_region
        %s208 = ssub.s32 %s25, 1
        // Predicated region
        $region13: #{tpu_custom_call.1} parent=11 // pred_check
          %p209 = pneg %p58
        $region14: #{tpu_custom_call.1} parent=11 // pred_check_branch
          %211 = sbr.rel (%p209) target = $region16
        $region15: #{tpu_custom_call.1} parent=11 // pred_region
          %s213 = ssub.s32 16, 16
          %214 = vsyncadd [#allocation10], %s213
          %217 = dma.hbm_to_smem %s0, 16, [#allocation7], [#allocation10]
        $region16: #{tpu_custom_call.1} parent=11 // pred_fallthru
          _
      $region12: #{tpu_custom_call.1} parent=5 // pred_fallthru
        _
      %p218 = scmp.lt.s32.totalorder %s25, 4
      // Predicated region
      $region17: #{tpu_custom_call.1} parent=5 // pred_check
        %p219 = pneg %p218
      $region18: #{tpu_custom_call.1} parent=5 // pred_check_branch
        %221 = sbr.rel (%p219) target = $region20
      $region19: #{tpu_custom_call.1} parent=5 // pred_region
        // Predicated region
        $region21: #{tpu_custom_call.1} parent=19 // pred_check
          %p222 = pneg %p80
        $region22: #{tpu_custom_call.1} parent=19 // pred_check_branch
          %224 = sbr.rel (%p222) target = $region24
        $region23: #{tpu_custom_call.1} parent=19 // pred_region
          %s225 = sand.u32 %s70, 1
          %s226 = scalar_lea.sflag [#allocation8], %s225
          %s227 = sand.u32 %s70, 1
          %s228 = smul.addr %s227, 16
          %s229 = scalar_lea.vmem [#allocation11], %s228
          %s231 = ssub.s32 256, 256
          %232 = vsyncadd %s226, %s231
          %s233 = smul.addr %s32, 2
          %s234 = sadd.s32 %s33, %s233
          %s235 = smul.addr %s234, 128
          %s236 = scalar_lea.hbm %s1, %s235
          %s237 = sshll.u32 %s229, 4
          %s238 = int_to_ptr.vmem [resolvable:$true] %s237
          %243 = dma.hbm_to_vmem [thread:$0]  %s236, 256, %s238, %s226, 512, 128, 8
        $region24: #{tpu_custom_call.1} parent=19 // pred_fallthru
          _
        // Predicated region
        $region25: #{tpu_custom_call.1} parent=19 // pred_check
          %p244 = pneg %p108
        $region26: #{tpu_custom_call.1} parent=19 // pred_check_branch
          %246 = sbr.rel (%p244) target = $region28
        $region27: #{tpu_custom_call.1} parent=19 // pred_region
          %s247 = sand.u32 %s98, 1
          %s248 = scalar_lea.sflag [#allocation13], %s247
          %s249 = sand.u32 %s98, 1
          %s250 = smul.addr %s249, 32
          %s251 = scalar_lea.vmem [#allocation12], %s250
          %s253 = ssub.s32 512, 512
          %254 = vsyncadd %s248, %s253
          %s255 = smul.addr %s32, 2
          %s256 = sadd.s32 %s33, %s255
          %s257 = smul.addr %s256, 128
          %s258 = scalar_lea.hbm %s2, %s257
          %s259 = sshll.u32 %s251, 4
          %s260 = int_to_ptr.vmem [resolvable:$true] %s259
          %265 = dma.hbm_to_vmem [thread:$0]  %s258, 512, %s260, %s248, 512, 128, 8
        $region28: #{tpu_custom_call.1} parent=19 // pred_fallthru
          _
        // Predicated region
        $region29: #{tpu_custom_call.1} parent=19 // pred_check
          %p266 = pneg %p134
        $region30: #{tpu_custom_call.1} parent=19 // pred_check_branch
          %268 = sbr.rel (%p266) target = $region32
        $region31: #{tpu_custom_call.1} parent=19 // pred_region
          %p269 = scmp.lt.s32.totalorder %s33, 1
          %s270 = scalar_select %p269, %s33, 1
          %s271 = scalar_lea.vmem %s3, %s270
        $region32: #{tpu_custom_call.1} parent=19 // pred_fallthru
          _
      $region20: #{tpu_custom_call.1} parent=5 // pred_fallthru
        _
      %p272 = scmp.le.s32.totalorder 1, %s25
      %p273 = scmp.lt.s32.totalorder %s25, 5
      %p274 = pnand %p272, %p273
      %p275 = pneg %p274
      // Predicated region
      $region33: #{tpu_custom_call.1} parent=5 // pred_check
        _
      $region34: #{tpu_custom_call.1} parent=5 // pred_check_branch
        %277 = sbr.rel (%p274) target = $region36
      $region35: #{tpu_custom_call.1} parent=5 // pred_region
        %s278 = ssub.s32 %s25, 1
        // Predicated region
        $region37: #{tpu_custom_call.1} parent=35 // pred_check
          %p279 = pneg %p58
        $region38: #{tpu_custom_call.1} parent=35 // pred_check_branch
          %281 = sbr.rel (%p279) target = $region40
        $region39: #{tpu_custom_call.1} parent=35 // pred_region
          %282 = dma.done [#allocation10], 16
        $region40: #{tpu_custom_call.1} parent=35 // pred_fallthru
          _
        %s283 = sand.u32 %s73, 1
        %s284 = scalar_lea.sflag [#allocation8], %s283
        %s285 = sand.u32 %s73, 1
        %s286 = smul.addr %s285, 16
        %s287 = scalar_lea.vmem [#allocation11], %s286
        // Predicated region
        $region41: #{tpu_custom_call.1} parent=35 // pred_check
          %p288 = pneg %p86
        $region42: #{tpu_custom_call.1} parent=35 // pred_check_branch
          %290 = sbr.rel (%p288) target = $region44
        $region43: #{tpu_custom_call.1} parent=35 // pred_region
          %291 = dma.done %s284, 256
        $region44: #{tpu_custom_call.1} parent=35 // pred_fallthru
          _
        %s292 = sand.u32 %s101, 1
        %s293 = scalar_lea.sflag [#allocation13], %s292
        %s294 = sand.u32 %s101, 1
        %s295 = smul.addr %s294, 32
        %s296 = scalar_lea.vmem [#allocation12], %s295
        // Predicated region
        $region45: #{tpu_custom_call.1} parent=35 // pred_check
          %p297 = pneg %p114
        $region46: #{tpu_custom_call.1} parent=35 // pred_check_branch
          %299 = sbr.rel (%p297) target = $region48
        $region47: #{tpu_custom_call.1} parent=35 // pred_region
          %300 = dma.done %s293, 512
        $region48: #{tpu_custom_call.1} parent=35 // pred_fallthru
          _
        %301 = sfence
        %p302 = pneg %p58
        %p303 = pneg %p55
        %s304 = sand.u32 %s73, 1
        %s305 = scalar_lea.sflag [#allocation8], %s304
        %s306 = sand.u32 %s73, 1
        %s307 = smul.addr %s306, 16
        %s308 = scalar_lea.vmem [#allocation11], %s307
        %p309 = pneg %p86
        %p310 = pneg %p83
        %s311 = sand.u32 %s101, 1
        %s312 = scalar_lea.sflag [#allocation13], %s311
        %s313 = sand.u32 %s101, 1
        %s314 = smul.addr %s313, 32
        %s315 = scalar_lea.vmem [#allocation12], %s314
        %p316 = pneg %p114
        %p317 = pneg %p111
        %p318 = scmp.lt.s32.totalorder %s35, 1
        %s319 = scalar_select %p318, %s35, 1
        %s320 = scalar_lea.vmem %s3, %s319
        %p321 = pneg %p140
        %p322 = pneg %p137
        %p323 = pneg %p166
        %p324 = pneg %p163
        %s325 = sand.u32 %s153, 1
        %s326 = scalar_lea.sflag [#allocation9], %s325
        %s327 = sand.u32 %s153, 1
        %s328 = scalar_lea.vmem [#allocation14], %s327
        %p329 = pneg %p194
        %p330 = pneg %p191
        %s331 = sand.u32 %s181, 1
        %s332 = scalar_lea.sflag [#allocation16], %s331
        %s333 = sand.u32 %s181, 1
        %s334 = scalar_lea.vmem [#allocation15], %s333
        %p335 = scmp.lt.s32.totalorder %s35, 1
        %s336 = scalar_select %p335, %s35, 1
        %s337 = scalar_lea.vmem %s3, %s336
        %s338 = sld [smem:[#allocation7]]
        %s339 = sld [smem:[#allocation7 + $0x1]]
        %p340 = scmp.eq.s32.totalorder %s35, 0
        // Predicated region
        $region49: #{tpu_custom_call.1} parent=35 // pred_check
          %p341 = pneg %p340
        $region50: #{tpu_custom_call.1} parent=35 // pred_check_branch
          %343 = sbr.rel (%p341) target = $region52
        $region51: #{tpu_custom_call.1} parent=35 // pred_region
          %vm344 = vcmask 7168
          %345 = vst.msk [vmem:[#allocation2] sm:$0xff] %vm344, -1e+30
          %346 = vst.msk [vmem:[#allocation2 + $0x8] sm:$0xff] %vm344, -1e+30
          %347 = vst.msk [vmem:[#allocation2 + $0x10] sm:$0xff] %vm344, -1e+30
          %348 = vst.msk [vmem:[#allocation2 + $0x18] sm:$0xff] %vm344, -1e+30
          %349 = vst.msk [vmem:[#allocation3] sm:$0xff] %vm344, 0.0
          %350 = vst.msk [vmem:[#allocation3 + $0x8] sm:$0xff] %vm344, 0.0
          %351 = vst.msk [vmem:[#allocation3 + $0x10] sm:$0xff] %vm344, 0.0
          %352 = vst.msk [vmem:[#allocation3 + $0x18] sm:$0xff] %vm344, 0.0
          %353 = vst.msk [vmem:[#allocation4] sm:$0xff] %vm344, -1e+30
          %354 = vst.msk [vmem:[#allocation4 + $0x8] sm:$0xff] %vm344, -1e+30
          %355 = vst.msk [vmem:[#allocation5] sm:$0xff] %vm344, 0.0
          %356 = vst.msk [vmem:[#allocation5 + $0x8] sm:$0xff] %vm344, 0.0
          %357 = vst.msk [vmem:[#allocation6] sm:$0xff] %vm344, 0.0
          %358 = vst.msk [vmem:[#allocation6 + $0x8] sm:$0xff] %vm344, 0.0
        $region52: #{tpu_custom_call.1} parent=35 // pred_fallthru
          _
        %v359 = vld [vmem:[%s337] sm:$0x1]
        loop: start=0, step=1, limit=4
        $region53: #{tpu_custom_call.1} parent=35 // loop_pre_header
          _
        $region54: #{tpu_custom_call.1} parent=35 // loop_header
          %s361 = sphi 0, %s365
          %p362 = scmp.ge.s32.totalorder %s361, 4
          %v366 = vphi 0.0, %v397
        $region55: #{tpu_custom_call.1} parent=35 // loop_header_branch
          %364 = sbr.rel (%p362) target = $region59
        $region56: #{tpu_custom_call.1} parent=35 // loop_body
          %s367 = smul.u32 %s361, 8
          %s368 = scalar_lea.vmem %s296, %s367 [#allocation12]
          %v369 = vld [vmem:[%s368] sm:$0xff]
          %v370 = vstv %s339
          %v371 = vmul.f32 %v369, %v370
          %s372 = scalar_lea.vmem [#allocation2], %s367
          %v373 = vld [vmem:[%s372] sm:$0xff]
          %374 = vmax.xlane.f32.xlu0 %v371
          %v375 = vpop.xlane.xlu0 %374
          %v376 = vmax.f32 %v373, %v375
          %v377 = vsub.f32 %v373, %v376
          %v378 = vmul.f32 %v377, 1.442695
          %v379 = vpow.pop %v378
          %381 = vset.pattern.permute.xlu0 0
          %382 = vperm.xlu0 %381, %v376
          %v383 = vpop.permute.xlu0 %382
          %v385 = vsub.f32 %v371, %v383
          %v386 = vmul.f32 %v385, 1.442695
          %v387 = vpow.pop %v386
          %388 = vadd.xlane.f32.xlu0 %v387
          %v389 = vpop.xlane.xlu0 %388
          %vm390 = vcmask 7168
          %391 = vst.msk [vmem:[%s372] sm:$0xff] %vm390, %v376
          %s392 = scalar_lea.vmem [#allocation3], %s367
          %v393 = vld [vmem:[%s392] sm:$0xff]
          %v394 = vmul.f32 %v393, %v379
          %v395 = vadd.f32 %v394, %v389
          %396 = vst.msk [vmem:[%s392] sm:$0xff] %vm390, %v395
          %v397 = vadd.f32 %v366, %v371
        $region57: #{tpu_custom_call.1} parent=35 // loop_footer
          %s365 = sadd.s32 1, %s361
        $region58: #{tpu_custom_call.1} parent=35 // loop_footer_branch
          %360 = sbr.rel target = $region54
        $region59: #{tpu_custom_call.1} parent=35 // loop_exit
          _
        loop: start=0, step=1, limit=2
        $region60: #{tpu_custom_call.1} parent=35 // loop_pre_header
          _
        $region61: #{tpu_custom_call.1} parent=35 // loop_header
          %s399 = sphi 0, %s403
          %p400 = scmp.ge.s32.totalorder %s399, 2
          %v404 = vphi 0.0, %v414
        $region62: #{tpu_custom_call.1} parent=35 // loop_header_branch
          %402 = sbr.rel (%p400) target = $region66
        $region63: #{tpu_custom_call.1} parent=35 // loop_body
          %s405 = smul.u32 %s399, 8
          %s406 = scalar_lea.vmem %s287, %s405 [#allocation11]
          %v407 = vld [vmem:[%s406] sm:$0xff]
          %v408 = vrot.slane %v407, 4
          %v409 = vadd.f32 %v407, %v408
          %v410 = vrot.slane %v409, 2
          %v411 = vadd.f32 %v409, %v410
          %v412 = vrot.slane %v411, 1
          %v413 = vadd.f32 %v411, %v412
          %v414 = vadd.f32 %v404, %v413
          %v416 = vlaneseq
          %v417 = vshrl.u32 %v416, 7
          %v418 = vsub.s32 0, %v417
          %v419 = vrot.slane %v359, %v418
          %v421 = vsub.f32 %v407, %v419
          %v422 = vstv %s338
          %v423 = vmul.f32 %v421, %v422
          %s424 = scalar_lea.vmem [#allocation4], %s405
          %v425 = vld [vmem:[%s424] sm:$0xff]
          %426 = vmax.xlane.f32.xlu0 %v423
          %v427 = vpop.xlane.xlu0 %426
          %v428 = vmax.f32 %v425, %v427
          %v429 = vsub.f32 %v425, %v428
          %v430 = vmul.f32 %v429, 1.442695
          %v431 = vpow.pop %v430
          %433 = vset.pattern.permute.xlu0 0
          %434 = vperm.xlu0 %433, %v428
          %v435 = vpop.permute.xlu0 %434
          %v437 = vsub.f32 %v423, %v435
          %v438 = vmul.f32 %v437, 1.442695
          %v439 = vpow.pop %v438
          %s440 = scalar_lea.vmem %s296, %s405 [#allocation12]
          %v441 = vld [vmem:[%s440] sm:$0xff]
          %v442 = vstv %s339
          %v443 = vmul.f32 %v441, %v442
          %v444 = vsub.f32 %v366, %v443
          %vm445 = vcmask 7168
          %446 = vst.msk [vmem:[%s424] sm:$0xff] %vm445, %v428
          %s447 = scalar_lea.vmem [#allocation5], %s405
          %v448 = vld [vmem:[%s447] sm:$0xff]
          %v449 = vmul.f32 %v448, %v431
          %450 = vadd.xlane.f32.xlu0 %v439
          %v451 = vpop.xlane.xlu0 %450
          %v452 = vadd.f32 %v449, %v451
          %453 = vst.msk [vmem:[%s447] sm:$0xff] %vm445, %v452
          %s454 = scalar_lea.vmem [#allocation6], %s405
          %v455 = vld [vmem:[%s454] sm:$0xff]
          %v456 = vmul.f32 %v455, %v431
          %v457 = vmul.f32 %v439, %v444
          %458 = vadd.xlane.f32.xlu0 %v457
          %v459 = vpop.xlane.xlu0 %458
          %v460 = vadd.f32 %v456, %v459
          %461 = vst.msk [vmem:[%s454] sm:$0xff] %vm445, %v460
        $region64: #{tpu_custom_call.1} parent=35 // loop_footer
          %s403 = sadd.s32 1, %s399
        $region65: #{tpu_custom_call.1} parent=35 // loop_footer_branch
          %398 = sbr.rel target = $region61
        $region66: #{tpu_custom_call.1} parent=35 // loop_exit
          _
        %462 = vst [vmem:[%s334] sm:$0x1] %v404
        %p463 = scmp.eq.s32.totalorder %s35, 1
        // Predicated region
        $region67: #{tpu_custom_call.1} parent=35 // pred_check
          %p464 = pneg %p463
        $region68: #{tpu_custom_call.1} parent=35 // pred_check_branch
          %466 = sbr.rel (%p464) target = $region70
        $region69: #{tpu_custom_call.1} parent=35 // pred_region
          %v467 = vld [vmem:[#allocation2] sm:$0xff]
          %v468 = vld [vmem:[#allocation2 + $0x8] sm:$0xff]
          %v469 = vld [vmem:[#allocation2 + $0x10] sm:$0xff]
          %v470 = vld [vmem:[#allocation2 + $0x18] sm:$0xff]
          %v471 = vld [vmem:[#allocation3] sm:$0xff]
          %v472 = vld [vmem:[#allocation3 + $0x8] sm:$0xff]
          %v473 = vld [vmem:[#allocation3 + $0x10] sm:$0xff]
          %v474 = vld [vmem:[#allocation3 + $0x18] sm:$0xff]
          %v475 = vlog2.pop %v471
          %v476 = vmul.f32 %v475, 0.6931472
          %v477 = vlog2.pop %v472
          %v478 = vmul.f32 %v477, 0.6931472
          %v479 = vlog2.pop %v473
          %v480 = vmul.f32 %v479, 0.6931472
          %v481 = vlog2.pop %v474
          %v482 = vmul.f32 %v481, 0.6931472
          %v483 = vadd.f32 %v467, %v476
          %v484 = vadd.f32 %v468, %v478
          %v485 = vadd.f32 %v469, %v480
          %v486 = vadd.f32 %v470, %v482
          %vm487 = vcmask 7168
          %v488 = vsel %vm487, %v483, 0.0
          %v489 = vsel %vm487, %v484, 0.0
          %v490 = vadd.f32 %v488, %v489
          %v491 = vsel %vm487, %v485, 0.0
          %v492 = vadd.f32 %v490, %v491
          %v493 = vsel %vm487, %v486, 0.0
          %v494 = vadd.f32 %v492, %v493
          %v495 = vld [vmem:[#allocation5] sm:$0xff]
          %v496 = vrcp.pop %v495
          %v497 = vld [vmem:[#allocation6] sm:$0xff]
          %v498 = vmul.f32 %v497, %v496
          %v499 = vsub.f32 %v494, %v483
          %v500 = vsub.f32 %v498, %v499
          %v501 = vadd.f32 %v500, 0.0
          %s502 = scalar_lea.vmem [#allocation5], 8
          %v503 = vld [vmem:[%s502] sm:$0xff]
          %v504 = vrcp.pop %v503
          %s505 = scalar_lea.vmem [#allocation6], 8
          %v506 = vld [vmem:[%s505] sm:$0xff]
          %v507 = vmul.f32 %v506, %v504
          %v508 = vsub.f32 %v494, %v484
          %v509 = vsub.f32 %v507, %v508
          %v510 = vadd.f32 %v501, %v509
          %v511 = vsel %vm487, %v510, 0.0
          %v512 = vrot.slane %v511, 4
          %v513 = vadd.f32 %v511, %v512
          %v514 = vrot.slane %v513, 2
          %v515 = vadd.f32 %v513, %v514
          %v516 = vrot.slane %v515, 1
          %v517 = vadd.f32 %v515, %v516
          %v518 = vsub.f32 0.0, %v517
          %520 = vset.pattern.permute.xlu0 0
          %521 = vperm.xlu0 %520, %v518
          %v522 = vpop.permute.xlu0 %521
          %v524 = vadd.f32 %v522, 0.0
          %525 = vst [vmem:[%s328] sm:$0x1] %v524
        $region70: #{tpu_custom_call.1} parent=35 // pred_fallthru
          _
        %s526 = sand.u32 %s153, 1
        %s527 = scalar_lea.sflag [#allocation9], %s526
        %s528 = sand.u32 %s153, 1
        %s529 = scalar_lea.vmem [#allocation14], %s528
        %s530 = sand.u32 %s181, 1
        %s531 = scalar_lea.sflag [#allocation16], %s530
        %s532 = sand.u32 %s181, 1
        %s533 = scalar_lea.vmem [#allocation15], %s532
        // Predicated region
        $region71: #{tpu_custom_call.1} parent=35 // pred_check
          %p534 = pneg %p163
        $region72: #{tpu_custom_call.1} parent=35 // pred_check_branch
          %536 = sbr.rel (%p534) target = $region74
        $region73: #{tpu_custom_call.1} parent=35 // pred_region
          %s538 = ssub.s32 16, 16
          %539 = vsyncadd %s527, %s538
          %s540 = smul.addr %s34, 16
          %s541 = scalar_lea.hbm %s4, %s540
          %s543 = sshll.u32 %s529, 4
          %s544 = int_to_ptr.vmem [resolvable:$true] %s543
          %546 = dma.vmem_to_hbm [thread:$0]  %s544, 16, %s541, %s527
        $region74: #{tpu_custom_call.1} parent=35 // pred_fallthru
          _
        // Predicated region
        $region75: #{tpu_custom_call.1} parent=35 // pred_check
          %p547 = pneg %p191
        $region76: #{tpu_custom_call.1} parent=35 // pred_check_branch
          %549 = sbr.rel (%p547) target = $region78
        $region77: #{tpu_custom_call.1} parent=35 // pred_region
          %s551 = ssub.s32 16, 16
          %552 = vsyncadd %s531, %s551
          %s553 = smul.addr %s34, 2
          %s554 = sadd.s32 %s35, %s553
          %s555 = smul.addr %s554, 16
          %s556 = scalar_lea.hbm %s5, %s555
          %s558 = sshll.u32 %s533, 4
          %s559 = int_to_ptr.vmem [resolvable:$true] %s558
          %561 = dma.vmem_to_hbm [thread:$0]  %s559, 16, %s556, %s531
        $region78: #{tpu_custom_call.1} parent=35 // pred_fallthru
          _
      $region36: #{tpu_custom_call.1} parent=5 // pred_fallthru
        _
      %p562 = scmp.le.s32.totalorder 2, %s25
      // Predicated region
      $region79: #{tpu_custom_call.1} parent=5 // pred_check
        %p563 = pneg %p562
      $region80: #{tpu_custom_call.1} parent=5 // pred_check_branch
        %565 = sbr.rel (%p563) target = $region82
      $region81: #{tpu_custom_call.1} parent=5 // pred_region
        %s566 = ssub.s32 %s25, 2
        // Predicated region
        $region83: #{tpu_custom_call.1} parent=81 // pred_check
          %p567 = pneg %p169
        $region84: #{tpu_custom_call.1} parent=81 // pred_check_branch
          %569 = sbr.rel (%p567) target = $region86
        $region85: #{tpu_custom_call.1} parent=81 // pred_region
          %s570 = sand.u32 %s154, 1
          %s571 = scalar_lea.sflag [#allocation9], %s570
          %s572 = sand.u32 %s154, 1
          %s573 = scalar_lea.vmem [#allocation14], %s572
          %574 = dma.done %s571, 16
        $region86: #{tpu_custom_call.1} parent=81 // pred_fallthru
          _
        // Predicated region
        $region87: #{tpu_custom_call.1} parent=81 // pred_check
          %p575 = pneg %p197
        $region88: #{tpu_custom_call.1} parent=81 // pred_check_branch
          %577 = sbr.rel (%p575) target = $region90
        $region89: #{tpu_custom_call.1} parent=81 // pred_region
          %s578 = sand.u32 %s182, 1
          %s579 = scalar_lea.sflag [#allocation16], %s578
          %s580 = sand.u32 %s182, 1
          %s581 = scalar_lea.vmem [#allocation15], %s580
          %582 = dma.done %s579, 16
        $region90: #{tpu_custom_call.1} parent=81 // pred_fallthru
          _
      $region82: #{tpu_custom_call.1} parent=5 // pred_fallthru
        _
    $region6: #{tpu_custom_call.1} parent=1 // loop_footer
      %s29 = sadd.s32 1, %s25
    $region7: #{tpu_custom_call.1} parent=1 // loop_footer_branch
      %24 = sbr.rel target = $region3
    $region8: #{tpu_custom_call.1} parent=1 // loop_exit
      _
    %583 = vsyncpa [#allocation8], 1
    %s584 = scalar_lea.sflag [#allocation8], 1
    %585 = vsyncpa %s584, 1
    %586 = vsyncpa [#allocation13], 1
    %s587 = scalar_lea.sflag [#allocation13], 1
    %588 = vsyncpa %s587, 1
    %589 = vsyncpa [#allocation9], 1
    %s590 = scalar_lea.sflag [#allocation9], 1
    %591 = vsyncpa %s590, 1
    %592 = vsyncpa [#allocation16], 1
    %s593 = scalar_lea.sflag [#allocation16], 1
    %594 = vsyncpa %s593, 1
    %595 = vsyncpa [#allocation10], 1
    %s596 = scalar_lea.sflag [#allocation10], 1
    %597 = vsyncpa %s596, 1

</llo_original>
